<compile_context>
chip_gen: v5e
topology: v5e:2x2
jax: 0.10.0
libtpu: 0.0.40
codegen_flags: <defaults>
</compile_context>

<pallas_src>
import functools
import math

import jax
import jax.numpy as jnp
from jax.experimental import pallas as pl
from jax.experimental.pallas import tpu as pltpu


def _round_up(x, m):
    return ((x + m - 1) // m) * m


def _choose_row_tile(m, t_max, min_tiles=1):
    """Row-tile size (multiple of 8, <= t_max) minimizing padded rows.

    Prefers >= min_tiles tiles (so both v7x TensorCores get work) when that
    does not increase padding.  Returns (tile, padded_m).
    """
    t_max = max(8, (t_max // 8) * 8)
    target = _round_up(m, 8)
    n0 = max(1, min(min_tiles, m // 8), -(-m // t_max))
    best = None
    for n in range(n0, n0 + 64):
        tile = min(_round_up(-(-m // n), 8), t_max)
        if tile * n < m:
            continue
        padded = tile * n
        if best is None or padded < best[0]:
            best = (padded, tile)
        if padded == target:
            break
    if best is None:
        return t_max, _round_up(m, t_max)
    return best[1], best[0]


def _const_spec(block_shape, index_map):
    """BlockSpec for grid-invariant operands: single-buffered when supported."""
    try:
        return pl.BlockSpec(block_shape, index_map, pipeline_mode=pl.Buffered(1))
    except Exception:  # older jax without pipeline_mode / Buffered
        return pl.BlockSpec(block_shape, index_map)


def _vmem_limit(footprint_bytes):
    lim = int(footprint_bytes * 1.3) + (4 << 20)
    return int(min(max(lim, 32 << 20), 56 << 20))


def _to_heads(a, rows, num_heads, dh):
    if num_heads == 1:
        return a.reshape(1, rows, dh)
    return a.reshape(rows, num_heads, dh).transpose(1, 0, 2)


def _from_heads(a, rows, num_heads, dh):
    if num_heads == 1:
        return a.reshape(rows, dh)
    return a.transpose(1, 0, 2).reshape(rows, num_heads * dh)


# ---------------------------------------------------------------------------
# Kernel 0: fused K/V projection of x2 (one (D, 2D) MXU call per Sk tile)
# ---------------------------------------------------------------------------
def _kv_proj_kernel(x2_ref, wkv_ref, bkv_ref, k_ref, v_ref):
    x = x2_ref[0]                                           # (tk, D)
    d = x.shape[-1]
    kv = jnp.dot(x, wkv_ref[...], preferred_element_type=jnp.float32) + bkv_ref[...]
    k_ref[0] = kv[:, :d].astype(k_ref.dtype)
    v_ref[0] = kv[:, d:].astype(v_ref.dtype)


# ---------------------------------------------------------------------------
# Kernel 1: flash cross-attention + residual + LayerNorm1
# ---------------------------------------------------------------------------
def _flash_attn_ln_kernel(x1_ref, k_ref, v_ref, wq_ref, c1_ref, o_ref,
                          q_scr, m_scr, l_scr, acc_scr,
                          *, num_heads, scale, eps, sk_valid, mask_sk):
    ki = pl.program_id(2)
    d = x1_ref.shape[-1]
    dh = d // num_heads
    tq = x1_ref.shape[1]
    tk = k_ref.shape[1]

    @pl.when(ki == 0)
    def _():
        x1 = x1_ref[0]                                      # (tq, D)
        q = jnp.dot(x1, wq_ref[...], preferred_element_type=jnp.float32)
        q = (q + c1_ref[0:1, :]) * scale                    # fold 1/sqrt(dh) into Q
        q_scr[...] = _to_heads(q, tq, num_heads, dh).astype(q_scr.dtype)
        m_scr[...] = jnp.full(m_scr.shape, -jnp.inf, jnp.float32)
        l_scr[...] = jnp.zeros_like(l_scr)
        acc_scr[...] = jnp.zeros_like(acc_scr)

    k3 = _to_heads(k_ref[0], tk, num_heads, dh)             # (H, tk, dh)
    v3 = _to_heads(v_ref[0], tk, num_heads, dh)
    q3 = q_scr[...]                                         # (H, tq, dh)

    # scores (H, tq, tk) on the MXU (batched over the head dim)
    s = jax.lax.dot_general(q3, k3, (((2,), (2,)), ((0,), (0,))),
                            preferred_element_type=jnp.float32)
    if mask_sk:
        kpos = ki * tk + jax.lax.broadcasted_iota(jnp.int32, s.shape, 2)
        s = jnp.where(kpos < sk_valid, s, -jnp.inf)

    m_prev = m_scr[...]
    m_new = jnp.maximum(m_prev, jnp.max(s, axis=-1, keepdims=True))
    alpha = jnp.exp(m_prev - m_new)
    p = jnp.exp(s - m_new)
    l_scr[...] = alpha * l_scr[...] + jnp.sum(p, axis=-1, keepdims=True)
    acc_scr[...] = alpha * acc_scr[...] + jax.lax.dot_general(
        p.astype(v3.dtype), v3, (((2,), (1,)), ((0,), (0,))),
        preferred_element_type=jnp.float32)
    m_scr[...] = m_new

    @pl.when(ki == pl.num_programs(2) - 1)
    def _():
        # TODO(synk): dropout on attention probs / output is identity (eval mode).
        l = l_scr[...]
        inv = pl.reciprocal(l, approx=True)                 # EUP
        inv = inv * (2.0 - l * inv)                         # one Newton step (f32 acc)
        ctx = _from_heads(acc_scr[...] * inv, tq, num_heads, dh)
        h1 = x1_ref[0].astype(jnp.float32) + ctx            # residual
        mu = jnp.mean(h1, axis=-1, keepdims=True)
        dc = h1 - mu
        var = jnp.mean(dc * dc, axis=-1, keepdims=True)
        y = dc * jax.lax.rsqrt(var + eps)
        o_ref[0] = (y * c1_ref[1:2, :] + c1_ref[2:3, :]).astype(o_ref.dtype)


# ---------------------------------------------------------------------------
# Kernel 2: FFN (d_ff-tiled reduction) + residual + LayerNorm2
# ---------------------------------------------------------------------------
def _ffn_res_ln_kernel(x_ref, w1_ref, b1_ref, w2_ref, c2_ref, o_ref, acc_ref,
                       *, eps):
    kk = pl.program_id(1)

    @pl.when(kk == 0)
    def _():
        acc_ref[...] = jnp.zeros_like(acc_ref)

    x = x_ref[...]                                          # (tm, D)
    h = jnp.dot(x, w1_ref[...], preferred_element_type=jnp.float32) + b1_ref[...]
    h = jnp.maximum(h, 0.0)                                 # ReLU (per d_ff tile)
    acc_ref[...] += jnp.dot(h.astype(x.dtype), w2_ref[...],
                            preferred_element_type=jnp.float32)

    @pl.when(kk == pl.num_programs(1) - 1)
    def _():
        # TODO(synk): dropout on the FFN output is identity (eval mode).
        z = x.astype(jnp.float32) + acc_ref[...] + c2_ref[0:1, :]   # bias + residual
        mu = jnp.mean(z, axis=-1, keepdims=True)
        dc = z - mu
        var = jnp.mean(dc * dc, axis=-1, keepdims=True)
        y = dc * jax.lax.rsqrt(var + eps)
        o_ref[...] = (y * c2_ref[1:2, :] + c2_ref[2:3, :]).astype(o_ref.dtype)


# ---------------------------------------------------------------------------
# Wrapper
# ---------------------------------------------------------------------------
def cross_attention_net_layer(x1, x2, params, *, num_heads=1, eps=1e-5,
                              tq_max=256, tk_attn_max=256,
                              tm_ffn=256, tk_ffn=512):
    """Forward pass of CrossAttentionNetLayer (inference; dropout = identity)."""
    assert tk_ffn % 128 == 0
    B, Sq, D = x1.shape
    Bk, Sk, Dk = x2.shape
    assert Bk == B and Dk == D and D % num_heads == 0
    dh = D // num_heads
    dt = x1.dtype
    isz = dt.itemsize

    wq, bq = params["wq"], params["bq"]
    wk, bk_ = params["wk"], params["bk"]
    wv, bv = params["wv"], params["bv"]
    g1, be1 = params["g1"], params["be1"]
    w1, b1 = params["w1"], params["b1"]
    w2, b2 = params["w2"], params["b2"]
    g2, be2 = params["g2"], params["be2"]
    d_ff = w1.shape[1]

    # Fused K/V projection weights: one (D, 2D) MXU call instead of two.
    wkv = jnp.concatenate([wk, wv], axis=1)
    bkv = jnp.concatenate([bk_, bv]).reshape(1, 2 * D)

    def pack_rows(*rows):
        m = jnp.zeros((8, D), dtype=rows[0].dtype)
        for i, r in enumerate(rows):
            m = m.at[i].set(r)
        return m

    consts1 = pack_rows(bq, g1, be1)        # rows 0..2: bq, gamma1, beta1
    consts2 = pack_rows(b2, g2, be2)        # rows 0..2: b2, gamma2, beta2

    # ---- tiling -------------------------------------------------------------
    tq, Sq_p = _choose_row_tile(Sq, tq_max, min_tiles=2 if B == 1 else 1)
    tk_a, Sk_p = _choose_row_tile(Sk, tk_attn_max)
    mask_sk = Sk_p != Sk
    nq, nk = Sq_p // tq, Sk_p // tk_a

    x1_p = jnp.pad(x1, ((0, 0), (0, Sq_p - Sq), (0, 0))) if Sq_p != Sq else x1
    x2_p = jnp.pad(x2, ((0, 0), (0, Sk_p - Sk), (0, 0))) if Sk_p != Sk else x2

    # ---- stage 0: fused K/V projection of x2 --------------------------------
    kv_foot = (2 * tk_a * D + 2 * D * D + 2 * D + 4 * tk_a * D) * isz
    k_arr, v_arr = pl.pallas_call(
        _kv_proj_kernel,
        out_shape=(jax.ShapeDtypeStruct((B, Sk_p, D), dt),
                   jax.ShapeDtypeStruct((B, Sk_p, D), dt)),
        grid_spec=pltpu.PrefetchScalarGridSpec(
            num_scalar_prefetch=0,
            grid=(B, nk),
            in_specs=[
                pl.BlockSpec((1, tk_a, D), lambda b, i: (b, i, 0)),
                _const_spec((D, 2 * D), lambda b, i: (0, 0)),
                _const_spec((1, 2 * D), lambda b, i: (0, 0)),
            ],
            out_specs=[
                pl.BlockSpec((1, tk_a, D), lambda b, i: (b, i, 0)),
                pl.BlockSpec((1, tk_a, D), lambda b, i: (b, i, 0)),
            ],
        ),
        compiler_params=pltpu.CompilerParams(
            dimension_semantics=("parallel", "parallel"),
            vmem_limit_bytes=_vmem_limit(kv_foot)),
        cost_estimate=pl.CostEstimate(
            flops=int(4 * B * Sk_p * D * D), transcendentals=0,
            bytes_accessed=int((3 * B * Sk_p * D + 2 * D * D + 2 * D) * isz)),
    )(x2_p, wkv, bkv)

    # ---- stage 1: flash cross-attention + residual + LayerNorm1 -------------
    attn_foot = ((4 * tq * D + 4 * tk_a * D + D * D + 8 * D) * isz
                 + num_heads * tq * (dh * isz + 4 * dh + 8 * 128))
    attn_flops = (2 * B * Sq_p * D * D + 4 * B * num_heads * Sq_p * Sk_p * dh
                  + 10 * B * Sq_p * D)
    attn_bytes = (2 * B * Sq_p * D + 2 * nq * B * Sk_p * D + D * D + 8 * D) * isz
    h = pl.pallas_call(
        functools.partial(_flash_attn_ln_kernel, num_heads=num_heads,
                          scale=1.0 / math.sqrt(dh), eps=eps,
                          sk_valid=Sk, mask_sk=mask_sk),
        out_shape=jax.ShapeDtypeStruct((B, Sq_p, D), dt),
        grid_spec=pltpu.PrefetchScalarGridSpec(
            num_scalar_prefetch=0,
            grid=(B, nq, nk),
            in_specs=[
                pl.BlockSpec((1, tq, D), lambda b, qi, ki: (b, qi, 0)),
                pl.BlockSpec((1, tk_a, D), lambda b, qi, ki: (b, ki, 0)),
                pl.BlockSpec((1, tk_a, D), lambda b, qi, ki: (b, ki, 0)),
                _const_spec((D, D), lambda b, qi, ki: (0, 0)),
                _const_spec((8, D), lambda b, qi, ki: (0, 0)),
            ],
            out_specs=pl.BlockSpec((1, tq, D), lambda b, qi, ki: (b, qi, 0)),
            scratch_shapes=[
                pltpu.VMEM((num_heads, tq, dh), dt),           # scaled Q (heads)
                pltpu.VMEM((num_heads, tq, 1), jnp.float32),   # running max
                pltpu.VMEM((num_heads, tq, 1), jnp.float32),   # running sum
                pltpu.VMEM((num_heads, tq, dh), jnp.float32),  # context acc
            ],
        ),
        compiler_params=pltpu.CompilerParams(
            dimension_semantics=("parallel", "parallel", "arbitrary"),
            vmem_limit_bytes=_vmem_limit(attn_foot)),
        cost_estimate=pl.CostEstimate(
            flops=int(attn_flops),
            transcendentals=int(B * num_heads * Sq_p * (Sk_p + 2 * nk)),
            bytes_accessed=int(attn_bytes)),
    )(x1_p, k_arr, v_arr, wq, consts1)

    # ---- stage 2: FFN (d_ff-tiled reduction) + residual + LayerNorm2 --------
    h2d = (h[:, :Sq, :] if Sq_p != Sq else h).reshape(B * Sq, D)
    M = h2d.shape[0]
    tm_eff, Mp = _choose_row_tile(M, tm_ffn, min_tiles=2)
    if Mp != M:
        h2d = jnp.pad(h2d, ((0, Mp - M), (0, 0)))

    if d_ff <= tk_ffn:
        tk_eff, d_ff_p = d_ff, d_ff
        w1p, b1p, w2p = w1, b1, w2
    else:
        tk_eff = tk_ffn
        d_ff_p = _round_up(d_ff, tk_eff)
        pad = d_ff_p - d_ff
        w1p = jnp.pad(w1, ((0, 0), (0, pad)))
        b1p = jnp.pad(b1, (0, pad))
        w2p = jnp.pad(w2, ((0, pad), (0, 0)))
    b1p = b1p.reshape(1, d_ff_p)

    ffn_foot = ((4 * tm_eff * D + 2 * D * tk_eff + 2 * tk_eff + 2 * tk_eff * D
                 + 8 * D) * isz + 4 * tm_eff * D)
    ffn_bytes = (2 * Mp * D + (Mp // tm_eff) * (2 * D * d_ff_p + d_ff_p)
                 + 8 * D) * isz
    out = pl.pallas_call(
        functools.partial(_ffn_res_ln_kernel, eps=eps),
        out_shape=jax.ShapeDtypeStruct((Mp, D), dt),
        grid_spec=pltpu.PrefetchScalarGridSpec(
            num_scalar_prefetch=0,
            grid=(Mp // tm_eff, d_ff_p // tk_eff),
            in_specs=[
                pl.BlockSpec((tm_eff, D), lambda i, k: (i, 0)),     # x rows
                pl.BlockSpec((D, tk_eff), lambda i, k: (0, k)),     # w1 col tile
                pl.BlockSpec((1, tk_eff), lambda i, k: (0, k)),     # b1 tile
                pl.BlockSpec((tk_eff, D), lambda i, k: (k, 0)),     # w2 row tile
                _const_spec((8, D), lambda i, k: (0, 0)),           # b2/gamma2/beta2
            ],
            out_specs=pl.BlockSpec((tm_eff, D), lambda i, k: (i, 0)),
            scratch_shapes=[pltpu.VMEM((tm_eff, D), jnp.float32)],
        ),
        compiler_params=pltpu.CompilerParams(
            dimension_semantics=("parallel", "arbitrary"),
            vmem_limit_bytes=_vmem_limit(ffn_foot)),
        cost_estimate=pl.CostEstimate(
            flops=int(4 * Mp * D * d_ff_p + 10 * Mp * D), transcendentals=0,
            bytes_accessed=int(ffn_bytes)),
    )(h2d, w1p, b1p, w2p, consts2)

    return out[:M].reshape(B, Sq, D)


if __name__ == "__main__":
    batch, seq_q, seq_k, d_model, d_ff = 2, 8, 8, 32, 64
    num_heads = 1

    key = jax.random.PRNGKey(0)
    ks = jax.random.split(key, 16)

    def lin(kw, kb, fan_in, shape_w, shape_b):
        bound = 1.0 / math.sqrt(fan_in)
        w = jax.random.uniform(kw, shape_w, jnp.float32, -bound, bound)
        b = jax.random.uniform(kb, shape_b, jnp.float32, -bound, bound)
        return w, b

    x1 = jax.random.normal(ks[0], (batch, seq_q, d_model), jnp.float32)
    x2 = jax.random.normal(ks[1], (batch, seq_k, d_model), jnp.float32)

    wq, bq = lin(ks[2], ks[3], d_model, (d_model, d_model), (d_model,))
    wk, bk = lin(ks[4], ks[5], d_model, (d_model, d_model), (d_model,))
    wv, bv = lin(ks[6], ks[7], d_model, (d_model, d_model), (d_model,))
    w1, b1 = lin(ks[8], ks[9], d_model, (d_model, d_ff), (d_ff,))
    w2, b2 = lin(ks[10], ks[11], d_ff, (d_ff, d_model), (d_model,))
    g1 = 1.0 + 0.1 * jax.random.normal(ks[12], (d_model,), jnp.float32)
    be1 = 0.1 * jax.random.normal(ks[13], (d_model,), jnp.float32)
    g2 = 1.0 + 0.1 * jax.random.normal(ks[14], (d_model,), jnp.float32)
    be2 = 0.1 * jax.random.normal(ks[15], (d_model,), jnp.float32)

    params = dict(wq=wq, bq=bq, wk=wk, bk=bk, wv=wv, bv=bv,
                  g1=g1, be1=be1, w1=w1, b1=b1, w2=w2, b2=b2,
                  g2=g2, be2=be2)

    y = cross_attention_net_layer(x1, x2, params, num_heads=num_heads)
    y = jax.block_until_ready(y)

    # ---- pure-JAX reference (eval mode: dropout = identity) -----------------
    def layer_norm(a, gamma, beta, eps=1e-5):
        mu = a.mean(-1, keepdims=True)
        var = ((a - mu) ** 2).mean(-1, keepdims=True)
        return (a - mu) * jax.lax.rsqrt(var + eps) * gamma + beta

    dh = d_model // num_heads
    qr = (x1 @ wq + bq).reshape(batch, seq_q, num_heads, dh).transpose(0, 2, 1, 3)
    kr = (x2 @ wk + bk).reshape(batch, seq_k, num_heads, dh).transpose(0, 2, 1, 3)
    vr = (x2 @ wv + bv).reshape(batch, seq_k, num_heads, dh).transpose(0, 2, 1, 3)
    s = jnp.einsum("bhqd,bhkd->bhqk", qr, kr) / math.sqrt(dh)
    p = jax.nn.softmax(s, axis=-1)
    ctx = jnp.einsum("bhqk,bhkd->bhqd", p, vr).transpose(0, 2, 1, 3)
    ctx = ctx.reshape(batch, seq_q, d_model)
    h_ref = layer_norm(x1 + ctx, g1, be1)
    ff = jnp.maximum(h_ref @ w1 + b1, 0.0) @ w2 + b2
    y_ref = layer_norm(h_ref + ff, g2, be2)

    assert y.shape == (batch, seq_q, d_model)
    assert jnp.allclose(y, y_ref, atol=1e-3, rtol=1e-3), "mismatch vs reference"
    print("KERNEL_OK")
</pallas_src>

<mosaic_0001>
module attributes {stable_mosaic.version = 11 : i64} {
  func.func @_kv_proj_kernel(%arg0: i32, %arg1: i32, %arg2: memref<1x8x32xf32, #tpu.memory_space<vmem>>, %arg3: memref<32x64xf32, #tpu.memory_space<vmem>>, %arg4: memref<1x64xf32, #tpu.memory_space<vmem>>, %arg5: memref<1x8x32xf32, #tpu.memory_space<vmem>>, %arg6: memref<1x8x32xf32, #tpu.memory_space<vmem>>) attributes {dimension_semantics = [#tpu.dimension_semantics<parallel>, #tpu.dimension_semantics<parallel>], iteration_bounds = array<i64: 2, 1>, scalar_prefetch = 0 : i64, scratch_operands = 0 : i64, tpu.core_type = #tpu.core_type<tc>, window_params = [{transform_indices = @transform_0, window_bounds = array<i64: 1, 8, 32>}, {pipeline_mode = #tpu.pipeline_mode<synchronous>, transform_indices = @transform_1, window_bounds = array<i64: 32, 64>}, {pipeline_mode = #tpu.pipeline_mode<synchronous>, transform_indices = @transform_2, window_bounds = array<i64: 1, 64>}, {transform_indices = @transform_3, window_bounds = array<i64: 1, 8, 32>}, {transform_indices = @transform_4, window_bounds = array<i64: 1, 8, 32>}]} {
    %c0 = arith.constant 0 : index
    %c0_0 = arith.constant 0 : index
    %c0_1 = arith.constant 0 : index
    %0 = vector.load %arg2[%c0, %c0_0, %c0_1] : memref<1x8x32xf32, #tpu.memory_space<vmem>>, vector<1x8x32xf32>
    %1 = vector.shape_cast %0 : vector<1x8x32xf32> to vector<8x32xf32>
    %c0_2 = arith.constant 0 : index
    %c0_3 = arith.constant 0 : index
    %2 = vector.load %arg3[%c0_2, %c0_3] : memref<32x64xf32, #tpu.memory_space<vmem>>, vector<32x64xf32>
    %cst = arith.constant dense<0.000000e+00> : vector<8x64xf32>
    %3 = tpu.matmul %1, %2, %cst {dimension_numbers = #tpu.dot_dimension_numbers<[1], [0], [0], [1], [0, 0, 1, 1], [], []>} : vector<8x32xf32>, vector<32x64xf32>, vector<8x64xf32> -> vector<8x64xf32>
    %c0_4 = arith.constant 0 : index
    %c0_5 = arith.constant 0 : index
    %4 = vector.load %arg4[%c0_4, %c0_5] : memref<1x64xf32, #tpu.memory_space<vmem>>, vector<1x64xf32>
    %5 = vector.broadcast %4 : vector<1x64xf32> to vector<8x64xf32>
    %6 = arith.addf %3, %5 : vector<8x64xf32>
    %7 = vector.extract_strided_slice %6 {offsets = [0, 0], sizes = [8, 32], strides = [1, 1]} : vector<8x64xf32> to vector<8x32xf32>
    %c0_6 = arith.constant 0 : index
    %c0_7 = arith.constant 0 : index
    %c0_8 = arith.constant 0 : index
    %8 = vector.load %arg5[%c0_6, %c0_7, %c0_8] : memref<1x8x32xf32, #tpu.memory_space<vmem>>, vector<1x8x32xf32>
    %9 = vector.shape_cast %8 : vector<1x8x32xf32> to vector<8x32xf32>
    %10 = vector.shape_cast %7 : vector<8x32xf32> to vector<1x8x32xf32>
    tpu.vector_store %arg5[%c0_6, %c0_7, %c0_8], %10 {strides = array<i32>} : memref<1x8x32xf32, #tpu.memory_space<vmem>>, vector<1x8x32xf32>,
    %11 = vector.extract_strided_slice %6 {offsets = [0, 32], sizes = [8, 32], strides = [1, 1]} : vector<8x64xf32> to vector<8x32xf32>
    %c0_9 = arith.constant 0 : index
    %c0_10 = arith.constant 0 : index
    %c0_11 = arith.constant 0 : index
    %12 = vector.load %arg6[%c0_9, %c0_10, %c0_11] : memref<1x8x32xf32, #tpu.memory_space<vmem>>, vector<1x8x32xf32>
    %13 = vector.shape_cast %12 : vector<1x8x32xf32> to vector<8x32xf32>
    %14 = vector.shape_cast %11 : vector<8x32xf32> to vector<1x8x32xf32>
    tpu.vector_store %arg6[%c0_9, %c0_10, %c0_11], %14 {strides = array<i32>} : memref<1x8x32xf32, #tpu.memory_space<vmem>>, vector<1x8x32xf32>,
    return
  }
  func.func @transform_0(%arg0: i32, %arg1: i32) -> (i32, i32, i32) {
    %c0_i32 = arith.constant 0 : i32
    %c0_i32_0 = arith.constant 0 : i32
    return %arg0, %arg1, %c0_i32 : i32, i32, i32
  }
  func.func @transform_1(%arg0: i32, %arg1: i32) -> (i32, i32) {
    %c0_i32 = arith.constant 0 : i32
    %c0_i32_0 = arith.constant 0 : i32
    %c0_i32_1 = arith.constant 0 : i32
    return %c0_i32, %c0_i32_0 : i32, i32
  }
  func.func @transform_2(%arg0: i32, %arg1: i32) -> (i32, i32) {
    %c0_i32 = arith.constant 0 : i32
    %c0_i32_0 = arith.constant 0 : i32
    %c0_i32_1 = arith.constant 0 : i32
    return %c0_i32, %c0_i32_0 : i32, i32
  }
  func.func @transform_3(%arg0: i32, %arg1: i32) -> (i32, i32, i32) {
    %c0_i32 = arith.constant 0 : i32
    %c0_i32_0 = arith.constant 0 : i32
    return %arg0, %arg1, %c0_i32 : i32, i32, i32
  }
  func.func @transform_4(%arg0: i32, %arg1: i32) -> (i32, i32, i32) {
    %c0_i32 = arith.constant 0 : i32
    %c0_i32_0 = arith.constant 0 : i32
    return %arg0, %arg1, %c0_i32 : i32, i32, i32
  }
}

</mosaic_0001>

<llo_original>
// kernel: tpu_custom_call.1
$region0: #{tpu_custom_call.1}
  #allocation0 [shape = 'u32[]', space=smem, size = 0x4, offset = 0x4, fixed_abs, tag = 'smem constant byte address 0x4 - core index']
  #allocation1 [shape = 'u32[72,128]{1,0:T(1,128)}', space=vmem, size = 0x9000, scoped, tag = 'internal scratch']
  %s0 = inlined_call_operand.hbm [shape: f32[2,8,32], index: 0, kind: input, shape index: {}]
  %s1 = inlined_call_operand.hbm [shape: f32[32,64], index: 1, kind: input, shape index: {}]
  %s2 = inlined_call_operand.vmem [shape: f32[1,64], index: 2, kind: input, shape index: {}]
  %s3 = inlined_call_operand.hbm [shape: f32[2,8,32], index: 3, kind: output, shape index: {0}]
  %s4 = inlined_call_operand.hbm [shape: f32[2,8,32], index: 4, kind: output, shape index: {1}]
  %5 = xla_tuple %s3, %s4
  %s6 = sld [smem:[#allocation0]]
  $region61: #{tpu_custom_call.1} parent=0
    _
  %s8 = ssub.s32 1, %s6
  %s9 = scalar_select 0, %s8, %s6
  $region1: #{tpu_custom_call.1} parent=0
    #allocation2 [shape = 'u8[8192]{0}', space=vmem, size = 0x2000, scoped, tag = 'input window, operand 0']
    #allocation3 [shape = 's32[2]{0}', space=sflag, size = 0x8, scoped, tag = 'scoped memory for tpu_custom_call.1']
    #allocation4 [shape = 's32[2]{0}', space=sflag, size = 0x8, scoped, tag = 'scoped memory for tpu_custom_call.1']
    #allocation5 [shape = 'u8[16384]{0}', space=vmem, size = 0x4000, scoped, tag = 'input window, operand 1, single buffered']
    #allocation6 [shape = 's32[1]{0}', space=sflag, size = 0x4, scoped, tag = 'scoped memory for tpu_custom_call.1']
    #allocation7 [shape = 'u8[8192]{0}', space=vmem, size = 0x2000, scoped, tag = 'output window, operand 0']
    #allocation8 [shape = 'u8[8192]{0}', space=vmem, size = 0x2000, scoped, tag = 'output window, operand 1']
    #allocation9 [shape = 's32[2]{0}', space=sflag, size = 0x8, scoped, tag = 'scoped memory for tpu_custom_call.1']
    %10 = vsyncpa [#allocation3], 0
    %s11 = scalar_lea.sflag [#allocation3], 1
    %12 = vsyncpa %s11, 0
    %13 = vsyncpa [#allocation6], 0
    %14 = vsyncpa [#allocation4], 0
    %s15 = scalar_lea.sflag [#allocation4], 1
    %16 = vsyncpa %s15, 0
    %17 = vsyncpa [#allocation9], 0
    %s18 = scalar_lea.sflag [#allocation9], 1
    %19 = vsyncpa %s18, 0
    loop: start=0, step=1, limit=4
    $region2: #{tpu_custom_call.1} parent=1 // loop_pre_header
      _
    $region3: #{tpu_custom_call.1} parent=1 // loop_header
      %s21 = sphi 0, %s25
      %p22 = scmp.ge.s32.totalorder %s21, 4
      %s28 = sphi 0, %s40
      %s29 = sphi 0, %s36
      %s30 = sphi 0, %s28
      %s31 = sphi 0, %s29
      %s32 = sphi 0, %s30
      %s33 = sphi 0, %s31
      %s45 = sphi 0, %s47
      %s48 = sphi 0, %s45
      %s49 = sphi 0, %s48
      %s65 = sphi 0, %s49
      %s69 = sphi 0, %s69
      %s71 = sphi 0, %s69
      %s72 = sphi 0, %s71
      %s86 = sphi 0, %s72
      %s90 = sphi 0, %s90
      %s92 = sphi 0, %s90
      %s93 = sphi 0, %s92
      %s107 = sphi 0, %s93
      %s115 = sphi 0, %s117
      %s118 = sphi 0, %s115
      %s119 = sphi 0, %s118
      %s135 = sphi 0, %s119
      %s143 = sphi 0, %s145
      %s146 = sphi 0, %s143
      %s147 = sphi 0, %s146
      %s163 = sphi 0, %s147
    $region4: #{tpu_custom_call.1} parent=1 // loop_header_branch
      %24 = sbr.rel (%p22) target = $region8
    $region5: #{tpu_custom_call.1} parent=1 // loop_body
      %s26 = ssub.s32 %s21, 1
      %s27 = ssub.s32 %s21, 2
      %s34 = sadd.s32 1, %s29
      %p35 = scmp.ge.s32.totalorder %s34, 1
      %s36 = scalar_select %p35, 0, %s34
      %s37 = sadd.s32 1, %s28
      %s38 = scalar_select %p35, %s37, %s28
      %p39 = scmp.ge.s32.totalorder %s38, 2
      %s40 = scalar_select %p39, 0, %s38
      %s41 = ssub.s32 %s28, %s40
      %s42 = ssub.s32 %s29, %s36
      %s43 = sor.u32 %s41, %s42
      %p44 = scmp.eq.s32.totalorder %s43, 0
      %s46 = sadd.s32 %s45, 1
      %s47 = scalar_select %p44, %s45, %s46
      %p50 = pneg %p44
      %p51 = scmp.eq.s32.totalorder %s21, 1
      %p52 = por %p50, %p51
      %p53 = scmp.ne.s32.totalorder %s45, %s48
      %p54 = scmp.eq.s32.totalorder %s21, 0
      %p55 = por %p53, %p54
      %p56 = scmp.ne.s32.totalorder %s45, %s48
      %p57 = scmp.eq.s32.totalorder %s26, 1
      %p58 = por %p56, %p57
      %p59 = scmp.ne.s32.totalorder %s48, %s49
      %p60 = scmp.eq.s32.totalorder %s26, 0
      %p61 = por %p59, %p60
      %p62 = scmp.ne.s32.totalorder %s48, %s49
      %p63 = scmp.eq.s32.totalorder %s27, 1
      %p64 = por %p62, %p63
      %p66 = scmp.ne.s32.totalorder %s49, %s65
      %p67 = scmp.eq.s32.totalorder %s27, 0
      %p68 = por %p66, %p67
      %s70 = sadd.s32 %s69, 1
      %p73 = scmp.eq.s32.totalorder %s21, 1
      %p74 = scmp.ne.s32.totalorder %s69, %s71
      %p75 = scmp.eq.s32.totalorder %s21, 0
      %p76 = por %p74, %p75
      %p77 = scmp.ne.s32.totalorder %s69, %s71
      %p78 = scmp.eq.s32.totalorder %s26, 1
      %p79 = por %p77, %p78
      %p80 = scmp.ne.s32.totalorder %s71, %s72
      %p81 = scmp.eq.s32.totalorder %s26, 0
      %p82 = por %p80, %p81
      %p83 = scmp.ne.s32.totalorder %s71, %s72
      %p84 = scmp.eq.s32.totalorder %s27, 1
      %p85 = por %p83, %p84
      %p87 = scmp.ne.s32.totalorder %s72, %s86
      %p88 = scmp.eq.s32.totalorder %s27, 0
      %p89 = por %p87, %p88
      %s91 = sadd.s32 %s90, 1
      %p94 = scmp.eq.s32.totalorder %s21, 1
      %p95 = scmp.ne.s32.totalorder %s90, %s92
      %p96 = scmp.eq.s32.totalorder %s21, 0
      %p97 = por %p95, %p96
      %p98 = scmp.ne.s32.totalorder %s90, %s92
      %p99 = scmp.eq.s32.totalorder %s26, 1
      %p100 = por %p98, %p99
      %p101 = scmp.ne.s32.totalorder %s92, %s93
      %p102 = scmp.eq.s32.totalorder %s26, 0
      %p103 = por %p101, %p102
      %p104 = scmp.ne.s32.totalorder %s92, %s93
      %p105 = scmp.eq.s32.totalorder %s27, 1
      %p106 = por %p104, %p105
      %p108 = scmp.ne.s32.totalorder %s93, %s107
      %p109 = scmp.eq.s32.totalorder %s27, 0
      %p110 = por %p108, %p109
      %s111 = ssub.s32 %s28, %s40
      %s112 = ssub.s32 %s29, %s36
      %s113 = sor.u32 %s111, %s112
      %p114 = scmp.eq.s32.totalorder %s113, 0
      %s116 = sadd.s32 %s115, 1
      %s117 = scalar_select %p114, %s115, %s116
      %p120 = pneg %p114
      %p121 = scmp.eq.s32.totalorder %s21, 1
      %p122 = por %p120, %p121
      %p123 = scmp.ne.s32.totalorder %s115, %s118
      %p124 = scmp.eq.s32.totalorder %s21, 0
      %p125 = por %p123, %p124
      %p126 = scmp.ne.s32.totalorder %s115, %s118
      %p127 = scmp.eq.s32.totalorder %s26, 1
      %p128 = por %p126, %p127
      %p129 = scmp.ne.s32.totalorder %s118, %s119
      %p130 = scmp.eq.s32.totalorder %s26, 0
      %p131 = por %p129, %p130
      %p132 = scmp.ne.s32.totalorder %s118, %s119
      %p133 = scmp.eq.s32.totalorder %s27, 1
      %p134 = por %p132, %p133
      %p136 = scmp.ne.s32.totalorder %s119, %s135
      %p137 = scmp.eq.s32.totalorder %s27, 0
      %p138 = por %p136, %p137
      %s139 = ssub.s32 %s28, %s40
      %s140 = ssub.s32 %s29, %s36
      %s141 = sor.u32 %s139, %s140
      %p142 = scmp.eq.s32.totalorder %s141, 0
      %s144 = sadd.s32 %s143, 1
      %s145 = scalar_select %p142, %s143, %s144
      %p148 = pneg %p142
      %p149 = scmp.eq.s32.totalorder %s21, 1
      %p150 = por %p148, %p149
      %p151 = scmp.ne.s32.totalorder %s143, %s146
      %p152 = scmp.eq.s32.totalorder %s21, 0
      %p153 = por %p151, %p152
      %p154 = scmp.ne.s32.totalorder %s143, %s146
      %p155 = scmp.eq.s32.totalorder %s26, 1
      %p156 = por %p154, %p155
      %p157 = scmp.ne.s32.totalorder %s146, %s147
      %p158 = scmp.eq.s32.totalorder %s26, 0
      %p159 = por %p157, %p158
      %p160 = scmp.ne.s32.totalorder %s146, %s147
      %p161 = scmp.eq.s32.totalorder %s27, 1
      %p162 = por %p160, %p161
      %p164 = scmp.ne.s32.totalorder %s147, %s163
      %p165 = scmp.eq.s32.totalorder %s27, 0
      %p166 = por %p164, %p165
      %p167 = scmp.le.s32.totalorder 1, %s21
      %p168 = scmp.lt.s32.totalorder %s21, 3
      %p169 = pnand %p167, %p168
      %p170 = pneg %p169
      // Predicated region
      $region9: #{tpu_custom_call.1} parent=5 // pred_check
        _
      $region10: #{tpu_custom_call.1} parent=5 // pred_check_branch
        %172 = sbr.rel (%p169) target = $region12
      $region11: #{tpu_custom_call.1} parent=5 // pred_region
        %s173 = ssub.s32 %s21, 1
        // Predicated region
        $region13: #{tpu_custom_call.1} parent=11 // pred_check
          %p174 = pneg %p82
        $region14: #{tpu_custom_call.1} parent=11 // pred_check_branch
          %176 = sbr.rel (%p174) target = $region16
        $region15: #{tpu_custom_call.1} parent=11 // pred_region
          %178 = vsyncadd [#allocation6], 0
          %s179 = sshll.u32 %s1, 4
          %s180 = int_to_ptr.hbm [resolvable:$true] %s179
          %s181 = sshll.u32 [#allocation5], 4
          %s182 = int_to_ptr.vmem [resolvable:$true] %s181
          %187 = dma.hbm_to_vmem [thread:$0]  %s180, 512, %s182, [#allocation6], 128, 128, 8
        $region16: #{tpu_custom_call.1} parent=11 // pred_fallthru
          _
        // Predicated region
        $region17: #{tpu_custom_call.1} parent=11 // pred_check
          %p188 = pneg %p103
        $region18: #{tpu_custom_call.1} parent=11 // pred_check_branch
          %190 = sbr.rel (%p188) target = $region20
        $region19: #{tpu_custom_call.1} parent=11 // pred_region
          _
        $region20: #{tpu_custom_call.1} parent=11 // pred_fallthru
          _
      $region12: #{tpu_custom_call.1} parent=5 // pred_fallthru
        _
      %p191 = scmp.lt.s32.totalorder %s21, 2
      // Predicated region
      $region21: #{tpu_custom_call.1} parent=5 // pred_check
        %p192 = pneg %p191
      $region22: #{tpu_custom_call.1} parent=5 // pred_check_branch
        %194 = sbr.rel (%p192) target = $region24
      $region23: #{tpu_custom_call.1} parent=5 // pred_region
        // Predicated region
        $region25: #{tpu_custom_call.1} parent=23 // pred_check
          %p195 = pneg %p55
        $region26: #{tpu_custom_call.1} parent=23 // pred_check_branch
          %197 = sbr.rel (%p195) target = $region28
        $region27: #{tpu_custom_call.1} parent=23 // pred_region
          %s198 = sand.u32 %s45, 1
          %s199 = scalar_lea.sflag [#allocation3], %s198
          %s200 = sand.u32 %s45, 1
          %s201 = smul.addr %s200, 8
          %s202 = scalar_lea.vmem [#allocation2], %s201
          %204 = vsyncadd %s199, 0
          %s205 = sadd.s32 %s29, %s28
          %s206 = smul.addr %s205, 8
          %s207 = scalar_lea.hbm %s0, %s206
          %s209 = sshll.u32 %s207, 4
          %s210 = int_to_ptr.hbm [resolvable:$true] %s209
          %s211 = sshll.u32 %s202, 4
          %s212 = int_to_ptr.vmem [resolvable:$true] %s211
          %214 = dma.hbm_to_vmem [thread:$0]  %s210, 128, %s212, %s199
        $region28: #{tpu_custom_call.1} parent=23 // pred_fallthru
          _
      $region24: #{tpu_custom_call.1} parent=5 // pred_fallthru
        _
      %p215 = scmp.le.s32.totalorder 1, %s21
      %p216 = scmp.lt.s32.totalorder %s21, 3
      %p217 = pnand %p215, %p216
      %p218 = pneg %p217
      // Predicated region
      $region29: #{tpu_custom_call.1} parent=5 // pred_check
        _
      $region30: #{tpu_custom_call.1} parent=5 // pred_check_branch
        %220 = sbr.rel (%p217) target = $region32
      $region31: #{tpu_custom_call.1} parent=5 // pred_region
        %s221 = ssub.s32 %s21, 1
        %s222 = sand.u32 %s48, 1
        %s223 = scalar_lea.sflag [#allocation3], %s222
        %s224 = sand.u32 %s48, 1
        %s225 = smul.addr %s224, 8
        %s226 = scalar_lea.vmem [#allocation2], %s225
        // Predicated region
        $region33: #{tpu_custom_call.1} parent=31 // pred_check
          %p227 = pneg %p61
        $region34: #{tpu_custom_call.1} parent=31 // pred_check_branch
          %229 = sbr.rel (%p227) target = $region36
        $region35: #{tpu_custom_call.1} parent=31 // pred_region
          %231 = dma.done %s223, 128
        $region36: #{tpu_custom_call.1} parent=31 // pred_fallthru
          _
        // Predicated region
        $region37: #{tpu_custom_call.1} parent=31 // pred_check
          %p232 = pneg %p82
        $region38: #{tpu_custom_call.1} parent=31 // pred_check_branch
          %234 = sbr.rel (%p232) target = $region40
        $region39: #{tpu_custom_call.1} parent=31 // pred_region
          %236 = dma.done [#allocation6], 512
        $region40: #{tpu_custom_call.1} parent=31 // pred_fallthru
          _
        %s237 = sand.u32 %s48, 1
        %s238 = scalar_lea.sflag [#allocation3], %s237
        %s239 = sand.u32 %s48, 1
        %s240 = smul.addr %s239, 8
        %s241 = scalar_lea.vmem [#allocation2], %s240
        %p242 = pneg %p61
        %p243 = pneg %p58
        %p244 = pneg %p82
        %p245 = pneg %p79
        %p246 = pneg %p103
        %p247 = pneg %p100
        %p248 = pneg %p131
        %p249 = pneg %p128
        %s250 = sand.u32 %s118, 1
        %s251 = scalar_lea.sflag [#allocation4], %s250
        %s252 = sand.u32 %s118, 1
        %s253 = smul.addr %s252, 8
        %s254 = scalar_lea.vmem [#allocation7], %s253
        %p255 = pneg %p159
        %p256 = pneg %p156
        %s257 = sand.u32 %s146, 1
        %s258 = scalar_lea.sflag [#allocation9], %s257
        %s259 = sand.u32 %s146, 1
        %s260 = smul.addr %s259, 8
        %s261 = scalar_lea.vmem [#allocation8], %s260
        %v262 = vld [vmem:[%s226] sm:$0xff]
        %v263 = vld [vmem:[#allocation5] sm:$0xff]
        %v264 = vld [vmem:[#allocation5 + $0x8] sm:$0xff]
        %v265 = vld [vmem:[#allocation5 + $0x10] sm:$0xff]
        %v266 = vld [vmem:[#allocation5 + $0x18] sm:$0xff]
        %v267 = vld [vmem:[%s2] sm:$0x1]
        %v269 = vperm.slane %v267, 0
        %vm271 = vcmask 261120
        %v273 = vsel %vm271, %v262, 0
        %275 = vmatpush.msra.mxu0 0.0
        %276 = vmatpush.msra.mxu0 0.0
        %277 = vmatpush.msra.mxu0 0.0
        %278 = vmatpush.msra.mxu0 0.0
        %279 = vmatpush.msra.mxu0 0.0
        %280 = vmatpush.msra.mxu0 0.0
        %281 = vmatpush.msra.mxu0 0.0
        %282 = vmatpush.msra.mxu0 0.0
        %283 = vmatpush.msra.mxu0 0.0
        %284 = vmatpush.msra.mxu0 0.0
        %285 = vmatpush.msra.mxu0 0.0
        %286 = vmatpush.msra.mxu0 0.0
        %287 = vmatpush.msra.mxu0 %v266
        %288 = vmatpush.msra.mxu0 %v265
        %289 = vmatpush.msra.mxu0 %v264
        %290 = vmatpush.msra.mxu0 %v263
        %291 = vmatmul.f32.gmra.mxu0 %v273
        %v292 = vpop.f32.mrf.mxu0
        %v293 = vadd.f32 %v269, %v292
        %294 = vdwg.mxu0
        %295 = vst.msk [vmem:[%s254] sm:$0xff] %vm271, %v293
        %297 = vrot.lane.b32.xlu0 %v293, 96
        %v298 = vpop.permute.xlu0 %297
        %300 = vst.msk [vmem:[%s261] sm:$0xff] %vm271, %v298
        %s301 = sand.u32 %s118, 1
        %s302 = scalar_lea.sflag [#allocation4], %s301
        %s303 = sand.u32 %s118, 1
        %s304 = smul.addr %s303, 8
        %s305 = scalar_lea.vmem [#allocation7], %s304
        %s306 = sand.u32 %s146, 1
        %s307 = scalar_lea.sflag [#allocation9], %s306
        %s308 = sand.u32 %s146, 1
        %s309 = smul.addr %s308, 8
        %s310 = scalar_lea.vmem [#allocation8], %s309
        // Predicated region
        $region41: #{tpu_custom_call.1} parent=31 // pred_check
          %p311 = pneg %p128
        $region42: #{tpu_custom_call.1} parent=31 // pred_check_branch
          %313 = sbr.rel (%p311) target = $region44
        $region43: #{tpu_custom_call.1} parent=31 // pred_region
          %315 = vsyncadd %s302, 0
          %s316 = sadd.s32 %s31, %s30
          %s317 = smul.addr %s316, 8
          %s318 = scalar_lea.hbm %s3, %s317
          %s320 = sshll.u32 %s305, 4
          %s321 = int_to_ptr.vmem [resolvable:$true] %s320
          %s322 = sshll.u32 %s318, 4
          %s323 = int_to_ptr.hbm [resolvable:$true] %s322
          %325 = dma.vmem_to_hbm [thread:$0]  %s321, 128, %s323, %s302
        $region44: #{tpu_custom_call.1} parent=31 // pred_fallthru
          _
        // Predicated region
        $region45: #{tpu_custom_call.1} parent=31 // pred_check
          %p326 = pneg %p156
        $region46: #{tpu_custom_call.1} parent=31 // pred_check_branch
          %328 = sbr.rel (%p326) target = $region48
        $region47: #{tpu_custom_call.1} parent=31 // pred_region
          %330 = vsyncadd %s307, 0
          %s331 = sadd.s32 %s31, %s30
          %s332 = smul.addr %s331, 8
          %s333 = scalar_lea.hbm %s4, %s332
          %s335 = sshll.u32 %s310, 4
          %s336 = int_to_ptr.vmem [resolvable:$true] %s335
          %s337 = sshll.u32 %s333, 4
          %s338 = int_to_ptr.hbm [resolvable:$true] %s337
          %340 = dma.vmem_to_hbm [thread:$0]  %s336, 128, %s338, %s307
        $region48: #{tpu_custom_call.1} parent=31 // pred_fallthru
          _
      $region32: #{tpu_custom_call.1} parent=5 // pred_fallthru
        _
      %p341 = scmp.le.s32.totalorder 2, %s21
      // Predicated region
      $region49: #{tpu_custom_call.1} parent=5 // pred_check
        %p342 = pneg %p341
      $region50: #{tpu_custom_call.1} parent=5 // pred_check_branch
        %344 = sbr.rel (%p342) target = $region52
      $region51: #{tpu_custom_call.1} parent=5 // pred_region
        %s345 = ssub.s32 %s21, 2
        // Predicated region
        $region53: #{tpu_custom_call.1} parent=51 // pred_check
          %p346 = pneg %p134
        $region54: #{tpu_custom_call.1} parent=51 // pred_check_branch
          %348 = sbr.rel (%p346) target = $region56
        $region55: #{tpu_custom_call.1} parent=51 // pred_region
          %s349 = sand.u32 %s119, 1
          %s350 = scalar_lea.sflag [#allocation4], %s349
          %s351 = sand.u32 %s119, 1
          %s352 = smul.addr %s351, 8
          %s353 = scalar_lea.vmem [#allocation7], %s352
          %355 = dma.done %s350, 128
        $region56: #{tpu_custom_call.1} parent=51 // pred_fallthru
          _
        // Predicated region
        $region57: #{tpu_custom_call.1} parent=51 // pred_check
          %p356 = pneg %p162
        $region58: #{tpu_custom_call.1} parent=51 // pred_check_branch
          %358 = sbr.rel (%p356) target = $region60
        $region59: #{tpu_custom_call.1} parent=51 // pred_region
          %s359 = sand.u32 %s147, 1
          %s360 = scalar_lea.sflag [#allocation9], %s359
          %s361 = sand.u32 %s147, 1
          %s362 = smul.addr %s361, 8
          %s363 = scalar_lea.vmem [#allocation8], %s362
          %365 = dma.done %s360, 128
        $region60: #{tpu_custom_call.1} parent=51 // pred_fallthru
          _
      $region52: #{tpu_custom_call.1} parent=5 // pred_fallthru
        _
    $region6: #{tpu_custom_call.1} parent=1 // loop_footer
      %s25 = sadd.s32 1, %s21
    $region7: #{tpu_custom_call.1} parent=1 // loop_footer_branch
      %20 = sbr.rel target = $region3
    $region8: #{tpu_custom_call.1} parent=1 // loop_exit
      _
    %366 = vsyncpa [#allocation3], 1
    %s367 = scalar_lea.sflag [#allocation3], 1
    %368 = vsyncpa %s367, 1
    %369 = vsyncpa [#allocation6], 1
    %370 = vsyncpa [#allocation4], 1
    %s371 = scalar_lea.sflag [#allocation4], 1
    %372 = vsyncpa %s371, 1
    %373 = vsyncpa [#allocation9], 1
    %s374 = scalar_lea.sflag [#allocation9], 1
    %375 = vsyncpa %s374, 1

</llo_original>
